<compile_context>
chip_gen: v6e
topology: v6e:2x2x1
jax: 0.10.0
libtpu: 0.0.40
codegen_flags: <defaults>
</compile_context>

<pallas_src>
import jax
import jax.numpy as jnp
import numpy as np
from jax.experimental import pallas as pl
from jax.experimental.pallas import tpu as pltpu


def resblock_deconv_kernel(x_ref, w1t_ref, b1_ref, w2s_ref, b2_ref,
                           masks_ref, o_ref, stack_ref):
    x = x_ref[...]                                  # (C_in, W) with W = NB*L
    W = x.shape[1]
    Ch = w1t_ref.shape[0]

    # activation() -> ReLU on the input
    h = jnp.maximum(x, 0.0)

    # ConvTranspose1d(C_in -> Ch, kernel_size=1): channel matmul, lanes = NB*L.
    # (bf16 operand cast here would be a further MXU win; kept f32 for exact
    #  parity with the f32 reference.)
    a = jnp.dot(w1t_ref[...], h, preferred_element_type=jnp.float32) + b1_ref[...]
    r = jnp.maximum(a, 0.0)                          # (Ch, W)

    # Packed boundary masks: row 0 kills r[m-1] at each segment start,
    # row 1 kills r[m+1] at each segment end (also handles the tile wrap).
    mask_l = masks_ref[0:1, :]                       # (1, W)
    mask_r = masks_ref[1:2, :]                       # (1, W)

    # ConvTranspose1d(Ch -> C_in, kernel_size=3, padding=1):
    #   y[:, m] = W2[:,:,0]^T r[:, m+1] + W2[:,:,1]^T r[:, m] + W2[:,:,2]^T r[:, m-1] + b2
    # Shifts are lane rolls (XLU slot); pltpu.roll needs a non-negative shift,
    # so shift by W-1 == shift by -1 (mod W).  Write the three taps straight
    # into the preallocated (3*Ch, W) VMEM scratch (no concatenate copy).
    stack_ref[0:Ch, :] = pltpu.roll(r, shift=W - 1, axis=1) * mask_r   # r[:, m+1]
    stack_ref[Ch:2 * Ch, :] = r                                        # r[:, m]
    stack_ref[2 * Ch:3 * Ch, :] = pltpu.roll(r, shift=1, axis=1) * mask_l  # r[:, m-1]

    # Fused k=3 tap matmul: one MXU push with the stacked (C_in, 3*Ch) weight.
    y = (jnp.dot(w2s_ref[...], stack_ref[...], preferred_element_type=jnp.float32)
         + b2_ref[...])

    # residual add with the ORIGINAL (pre-activation) input
    o_ref[...] = (x + y).astype(o_ref.dtype)


def _pick_batch_block(N, C_in, Ch, L, vmem_budget_bytes=16 * 1024 * 1024):
    """Largest NB dividing N whose (C_in, NB*L) tile fits a conservative VMEM
    budget, preferring >= 2 grid steps so both v7x TensorCores get work."""
    def fits(nb):
        lanes = nb * L
        # generous per-lane f32 estimate: double-buffered in/out/masks,
        # 3-tap scratch, and the kernel's elementwise temporaries.
        per_lane_f32 = 6 * C_in + 7 * Ch + 4
        return 4 * per_lane_f32 * lanes <= vmem_budget_bytes

    candidates = []
    for nb in range(1, N + 1):
        if N % nb:
            continue
        # lane-dim block must be a multiple of 128 unless it spans the full array
        if (nb * L) % 128 != 0 and nb != N:
            continue
        if not fits(nb):
            continue
        candidates.append(nb)
    if not candidates:
        return N  # fall back to a single full-array block
    multi = [nb for nb in candidates if N // nb >= 2]
    return max(multi) if multi else max(candidates)


def resblock_deconv(x_ncl, w1, b1, w2, b2, nb=None):
    """x_ncl: (N, C_in, L)  (PyTorch layout)
       w1: (C_in, Ch, 1), b1: (Ch,)   -- ConvTranspose1d(in_channel, channel, 1)
       w2: (Ch, C_in, 3), b2: (C_in,) -- ConvTranspose1d(channel, in_channel, 3, padding=1)
    """
    N, C_in, L = x_ncl.shape
    Ch = w1.shape[1]

    if nb is None:
        nb = _pick_batch_block(N, C_in, Ch, L)
    assert N % nb == 0
    W = nb * L                      # lanes per grid step
    steps = N // nb

    # One-time lane-dense re-layout: (N, C_in, L) -> (C_in, N*L).
    x_cl = jnp.transpose(x_ncl, (1, 0, 2)).reshape(C_in, N * L)

    # Pre-transpose / stack weights so the kernel does (C_out, C_in) @ (C_in, W).
    w1t = jnp.transpose(w1[:, :, 0]).astype(jnp.float32)                 # (Ch, C_in)
    b1c = b1.reshape(Ch, 1).astype(jnp.float32)
    w2s = jnp.concatenate(
        [w2[:, :, 0].T, w2[:, :, 1].T, w2[:, :, 2].T], axis=1
    ).astype(jnp.float32)                                                # (C_in, 3*Ch)
    b2c = b2.reshape(C_in, 1).astype(jnp.float32)

    # Packed per-block edge masks (pattern repeats every L lanes, identical for
    # every grid step).  Zeros at every per-batch-element boundary so the lane
    # rolls never leak activations across batch elements.
    pos = jnp.arange(W, dtype=jnp.int32) % L
    masks = jnp.stack(
        [(pos > 0).astype(jnp.float32),        # mask_l: kills r[m-1] at segment start
         (pos < L - 1).astype(jnp.float32)],   # mask_r: kills r[m+1] at segment end
        axis=0)                                                           # (2, W)

    out_cl = pl.pallas_call(
        resblock_deconv_kernel,
        out_shape=jax.ShapeDtypeStruct((C_in, N * L), x_ncl.dtype),
        grid_spec=pltpu.PrefetchScalarGridSpec(
            num_scalar_prefetch=0,
            grid=(steps,),
            in_specs=[
                pl.BlockSpec((C_in, W), lambda b: (0, b)),        # x slab
                pl.BlockSpec((Ch, C_in), lambda b: (0, 0)),       # w1^T
                pl.BlockSpec((Ch, 1), lambda b: (0, 0)),          # b1
                pl.BlockSpec((C_in, 3 * Ch), lambda b: (0, 0)),   # stacked w2
                pl.BlockSpec((C_in, 1), lambda b: (0, 0)),        # b2
                pl.BlockSpec((2, W), lambda b: (0, 0)),           # packed masks
            ],
            out_specs=pl.BlockSpec((C_in, W), lambda b: (0, b)),
            scratch_shapes=[pltpu.VMEM((3 * Ch, W), jnp.float32)],
        ),
        compiler_params=pltpu.CompilerParams(
            dimension_semantics=("parallel",),
            vmem_limit_bytes=32 * 1024 * 1024),
    )(x_cl, w1t, b1c, w2s, b2c, masks)

    # Back to PyTorch's (N, C_in, L) layout.
    return jnp.transpose(out_cl.reshape(C_in, N, L), (1, 0, 2))


def reference_jax(x_ncl, w1, b1, w2, b2):
    """Pure-JAX reference of the PyTorch forward, for verification (NCL layout)."""
    h = jnp.maximum(x_ncl, 0.0)                                       # (N, C_in, L)
    a = jnp.einsum('ncl,cd->ndl', h, w1[:, :, 0]) + b1[None, :, None]
    r = jnp.maximum(a, 0.0)                                           # (N, Ch, L)
    N, Ch, L = r.shape
    zeros = jnp.zeros((N, Ch, 1), r.dtype)
    r_p = jnp.concatenate([r[:, :, 1:], zeros], axis=2)               # r[:, :, m+1]
    r_m = jnp.concatenate([zeros, r[:, :, :-1]], axis=2)              # r[:, :, m-1]
    y = (jnp.einsum('ndl,dc->ncl', r_p, w2[:, :, 0])
         + jnp.einsum('ndl,dc->ncl', r, w2[:, :, 1])
         + jnp.einsum('ndl,dc->ncl', r_m, w2[:, :, 2])
         + b2[None, :, None])
    return x_ncl + y


if __name__ == "__main__":
    # Small shapes consistent with the module: in_channel=4, channel=8.
    # L=128 keeps the spatial axis lane-dense; N=8 lets the batch-folding /
    # NB>1 path actually exercise (NB=4 -> grid=(2,), tiles of 512 lanes).
    N, C_in, Ch, L = 8, 4, 8, 128

    key = jax.random.PRNGKey(0)
    kx, kw1, kw2, kb1, kb2 = jax.random.split(key, 5)

    x = jax.random.normal(kx, (N, C_in, L), dtype=jnp.float32)

    # kaiming_uniform_-style deterministic init (bound = sqrt(6 / fan_in)).
    # Biases are zero-initialized in the module; use small nonzero values here
    # purely for better correctness coverage of the bias path.
    bound1 = float(np.sqrt(6.0 / (Ch * 1)))
    w1 = jax.random.uniform(kw1, (C_in, Ch, 1), jnp.float32, -bound1, bound1)
    b1 = 0.1 * jax.random.normal(kb1, (Ch,), jnp.float32)

    bound2 = float(np.sqrt(6.0 / (C_in * 3)))
    w2 = jax.random.uniform(kw2, (Ch, C_in, 3), jnp.float32, -bound2, bound2)
    b2 = 0.1 * jax.random.normal(kb2, (C_in,), jnp.float32)

    out = jax.block_until_ready(resblock_deconv(x, w1, b1, w2, b2))
    ref = jax.block_until_ready(reference_jax(x, w1, b1, w2, b2))

    np.testing.assert_allclose(np.asarray(out), np.asarray(ref),
                               rtol=1e-5, atol=1e-5)
    print("KERNEL_OK")
</pallas_src>

<mosaic_0001>
module attributes {stable_mosaic.version = 11 : i64} {
  func.func @resblock_deconv_kernel(%arg0: i32, %arg1: memref<4x512xf32, #tpu.memory_space<vmem>>, %arg2: memref<8x4xf32, #tpu.memory_space<vmem>>, %arg3: memref<8x1xf32, #tpu.memory_space<vmem>>, %arg4: memref<4x24xf32, #tpu.memory_space<vmem>>, %arg5: memref<4x1xf32, #tpu.memory_space<vmem>>, %arg6: memref<2x512xf32, #tpu.memory_space<vmem>>, %arg7: memref<4x512xf32, #tpu.memory_space<vmem>>, %arg8: memref<24x512xf32, #tpu.memory_space<vmem>>) attributes {dimension_semantics = [#tpu.dimension_semantics<parallel>], iteration_bounds = array<i64: 2>, scalar_prefetch = 0 : i64, scratch_operands = 1 : i64, tpu.core_type = #tpu.core_type<tc>, window_params = [{transform_indices = @transform_0, window_bounds = array<i64: 4, 512>}, {pipeline_mode = #tpu.pipeline_mode<synchronous>, transform_indices = @transform_1, window_bounds = array<i64: 8, 4>}, {pipeline_mode = #tpu.pipeline_mode<synchronous>, transform_indices = @transform_2, window_bounds = array<i64: 8, 1>}, {pipeline_mode = #tpu.pipeline_mode<synchronous>, transform_indices = @transform_3, window_bounds = array<i64: 4, 24>}, {pipeline_mode = #tpu.pipeline_mode<synchronous>, transform_indices = @transform_4, window_bounds = array<i64: 4, 1>}, {pipeline_mode = #tpu.pipeline_mode<synchronous>, transform_indices = @transform_5, window_bounds = array<i64: 2, 512>}, {transform_indices = @transform_6, window_bounds = array<i64: 4, 512>}]} {
    %c0 = arith.constant 0 : index
    %c0_0 = arith.constant 0 : index
    %0 = vector.load %arg1[%c0, %c0_0] : memref<4x512xf32, #tpu.memory_space<vmem>>, vector<4x512xf32>
    %cst = arith.constant 0.000000e+00 : f32
    %1 = vector.broadcast %cst : f32 to vector<4x512xf32>
    %2 = arith.maximumf %0, %1 : vector<4x512xf32>
    %c0_1 = arith.constant 0 : index
    %c0_2 = arith.constant 0 : index
    %3 = vector.load %arg2[%c0_1, %c0_2] : memref<8x4xf32, #tpu.memory_space<vmem>>, vector<8x4xf32>
    %cst_3 = arith.constant dense<0.000000e+00> : vector<8x512xf32>
    %4 = tpu.matmul %3, %2, %cst_3 {dimension_numbers = #tpu.dot_dimension_numbers<[1], [0], [0], [1], [0, 0, 1, 1], [], []>} : vector<8x4xf32>, vector<4x512xf32>, vector<8x512xf32> -> vector<8x512xf32>
    %c0_4 = arith.constant 0 : index
    %c0_5 = arith.constant 0 : index
    %5 = vector.load %arg3[%c0_4, %c0_5] : memref<8x1xf32, #tpu.memory_space<vmem>>, vector<8x1xf32>
    %6 = vector.broadcast %5 : vector<8x1xf32> to vector<8x512xf32>
    %7 = arith.addf %4, %6 : vector<8x512xf32>
    %cst_6 = arith.constant 0.000000e+00 : f32
    %8 = vector.broadcast %cst_6 : f32 to vector<8x512xf32>
    %9 = arith.maximumf %7, %8 : vector<8x512xf32>
    %c0_7 = arith.constant 0 : index
    %c0_8 = arith.constant 0 : index
    %10 = vector.load %arg6[%c0_7, %c0_8] : memref<2x512xf32, #tpu.memory_space<vmem>>, vector<1x512xf32>
    %c1 = arith.constant 1 : index
    %c0_9 = arith.constant 0 : index
    %11 = vector.load %arg6[%c1, %c0_9] : memref<2x512xf32, #tpu.memory_space<vmem>>, vector<1x512xf32>
    %c511_i32 = arith.constant 511 : i32
    %12 = tpu.dynamic_rotate %9 by %c511_i32 dim 1 : vector<8x512xf32>, i32 -> vector<8x512xf32>
    %13 = vector.broadcast %11 : vector<1x512xf32> to vector<8x512xf32>
    %14 = arith.mulf %12, %13 : vector<8x512xf32>
    %c0_10 = arith.constant 0 : index
    %c0_11 = arith.constant 0 : index
    %15 = vector.load %arg8[%c0_10, %c0_11] : memref<24x512xf32, #tpu.memory_space<vmem>>, vector<8x512xf32>
    tpu.vector_store %arg8[%c0_10, %c0_11], %14 {strides = array<i32>} : memref<24x512xf32, #tpu.memory_space<vmem>>, vector<8x512xf32>,
    %c8 = arith.constant 8 : index
    %c0_12 = arith.constant 0 : index
    %16 = vector.load %arg8[%c8, %c0_12] : memref<24x512xf32, #tpu.memory_space<vmem>>, vector<8x512xf32>
    tpu.vector_store %arg8[%c8, %c0_12], %9 {strides = array<i32>} : memref<24x512xf32, #tpu.memory_space<vmem>>, vector<8x512xf32>,
    %c1_i32 = arith.constant 1 : i32
    %17 = tpu.dynamic_rotate %9 by %c1_i32 dim 1 : vector<8x512xf32>, i32 -> vector<8x512xf32>
    %18 = vector.broadcast %10 : vector<1x512xf32> to vector<8x512xf32>
    %19 = arith.mulf %17, %18 : vector<8x512xf32>
    %c16 = arith.constant 16 : index
    %c0_13 = arith.constant 0 : index
    %20 = vector.load %arg8[%c16, %c0_13] : memref<24x512xf32, #tpu.memory_space<vmem>>, vector<8x512xf32>
    tpu.vector_store %arg8[%c16, %c0_13], %19 {strides = array<i32>} : memref<24x512xf32, #tpu.memory_space<vmem>>, vector<8x512xf32>,
    %c0_14 = arith.constant 0 : index
    %c0_15 = arith.constant 0 : index
    %21 = vector.load %arg4[%c0_14, %c0_15] : memref<4x24xf32, #tpu.memory_space<vmem>>, vector<4x24xf32>
    %c0_16 = arith.constant 0 : index
    %c0_17 = arith.constant 0 : index
    %22 = vector.load %arg8[%c0_16, %c0_17] : memref<24x512xf32, #tpu.memory_space<vmem>>, vector<24x512xf32>
    %cst_18 = arith.constant dense<0.000000e+00> : vector<4x512xf32>
    %23 = tpu.matmul %21, %22, %cst_18 {dimension_numbers = #tpu.dot_dimension_numbers<[1], [0], [0], [1], [0, 0, 1, 1], [], []>} : vector<4x24xf32>, vector<24x512xf32>, vector<4x512xf32> -> vector<4x512xf32>
    %c0_19 = arith.constant 0 : index
    %c0_20 = arith.constant 0 : index
    %24 = vector.load %arg5[%c0_19, %c0_20] : memref<4x1xf32, #tpu.memory_space<vmem>>, vector<4x1xf32>
    %25 = vector.broadcast %24 : vector<4x1xf32> to vector<4x512xf32>
    %26 = arith.addf %23, %25 : vector<4x512xf32>
    %27 = arith.addf %0, %26 : vector<4x512xf32>
    %c0_21 = arith.constant 0 : index
    %c0_22 = arith.constant 0 : index
    %28 = vector.load %arg7[%c0_21, %c0_22] : memref<4x512xf32, #tpu.memory_space<vmem>>, vector<4x512xf32>
    tpu.vector_store %arg7[%c0_21, %c0_22], %27 {strides = array<i32>} : memref<4x512xf32, #tpu.memory_space<vmem>>, vector<4x512xf32>,
    return
  }
  func.func @transform_0(%arg0: i32) -> (i32, i32) {
    %c0_i32 = arith.constant 0 : i32
    %c0_i32_0 = arith.constant 0 : i32
    return %c0_i32, %arg0 : i32, i32
  }
  func.func @transform_1(%arg0: i32) -> (i32, i32) {
    %c0_i32 = arith.constant 0 : i32
    %c0_i32_0 = arith.constant 0 : i32
    %c0_i32_1 = arith.constant 0 : i32
    return %c0_i32, %c0_i32_0 : i32, i32
  }
  func.func @transform_2(%arg0: i32) -> (i32, i32) {
    %c0_i32 = arith.constant 0 : i32
    %c0_i32_0 = arith.constant 0 : i32
    %c0_i32_1 = arith.constant 0 : i32
    return %c0_i32, %c0_i32_0 : i32, i32
  }
  func.func @transform_3(%arg0: i32) -> (i32, i32) {
    %c0_i32 = arith.constant 0 : i32
    %c0_i32_0 = arith.constant 0 : i32
    %c0_i32_1 = arith.constant 0 : i32
    return %c0_i32, %c0_i32_0 : i32, i32
  }
  func.func @transform_4(%arg0: i32) -> (i32, i32) {
    %c0_i32 = arith.constant 0 : i32
    %c0_i32_0 = arith.constant 0 : i32
    %c0_i32_1 = arith.constant 0 : i32
    return %c0_i32, %c0_i32_0 : i32, i32
  }
  func.func @transform_5(%arg0: i32) -> (i32, i32) {
    %c0_i32 = arith.constant 0 : i32
    %c0_i32_0 = arith.constant 0 : i32
    %c0_i32_1 = arith.constant 0 : i32
    return %c0_i32, %c0_i32_0 : i32, i32
  }
  func.func @transform_6(%arg0: i32) -> (i32, i32) {
    %c0_i32 = arith.constant 0 : i32
    %c0_i32_0 = arith.constant 0 : i32
    return %c0_i32, %arg0 : i32, i32
  }
}

</mosaic_0001>

<llo_original>
// kernel: tpu_custom_call.1
$region0: #{tpu_custom_call.1}
  #allocation0 [shape = 'u32[]', space=smem, size = 0x4, offset = 0x4, fixed_abs, tag = 'smem constant byte address 0x4 - core index']
  #allocation1 [shape = 'u32[144,128]{1,0:T(1,128)}', space=vmem, size = 0x12000, scoped, tag = 'internal scratch']
  #allocation2 [shape = 'f32[24,512]{1,0:T(8,128)}', space=vmem, size = 0xc000, scoped, tag = 'scratch operand']
  %s0 = inlined_call_operand.hbm [shape: f32[4,1024], index: 0, kind: input, shape index: {}]
  %s1 = inlined_call_operand.vmem [shape: f32[8,4], index: 1, kind: input, shape index: {}]
  %s2 = inlined_call_operand.vmem [shape: f32[8,1], index: 2, kind: input, shape index: {}]
  %s3 = inlined_call_operand.vmem [shape: f32[4,24], index: 3, kind: input, shape index: {}]
  %s4 = inlined_call_operand.vmem [shape: f32[4,1], index: 4, kind: input, shape index: {}]
  %s5 = inlined_call_operand.vmem [shape: f32[2,512], index: 5, kind: input, shape index: {}]
  %s6 = inlined_call_operand.hbm [shape: f32[4,1024], index: 6, kind: output, shape index: {}]
  %s7 = sld [smem:[#allocation0]]
  $region61: #{tpu_custom_call.1} parent=0
    _
  %s9 = ssub.s32 1, %s7
  %s10 = scalar_select 0, %s9, %s7
  $region1: #{tpu_custom_call.1} parent=0
    #allocation3 [shape = 'u8[16384]{0}', space=vmem, size = 0x4000, scoped, tag = 'input window, operand 0']
    #allocation4 [shape = 's32[2]{0}', space=sflag, size = 0x8, scoped, tag = 'scoped memory for tpu_custom_call.1']
    #allocation5 [shape = 's32[2]{0}', space=sflag, size = 0x8, scoped, tag = 'scoped memory for tpu_custom_call.1']
    #allocation6 [shape = 'u8[16384]{0}', space=vmem, size = 0x4000, scoped, tag = 'output window, operand 0']
    %11 = vsyncpa [#allocation4], 0
    %s12 = scalar_lea.sflag [#allocation4], 1
    %13 = vsyncpa %s12, 0
    %14 = vsyncpa [#allocation5], 0
    %s15 = scalar_lea.sflag [#allocation5], 1
    %16 = vsyncpa %s15, 0
    loop: start=0, step=1, limit=4
    $region2: #{tpu_custom_call.1} parent=1 // loop_pre_header
      _
    $region3: #{tpu_custom_call.1} parent=1 // loop_header
      %s18 = sphi 0, %s22
      %p19 = scmp.ge.s32.totalorder %s18, 4
      %s28 = sphi 0, %s30
      %s31 = sphi 0, %s28
      %s32 = sphi 0, %s31
      %s48 = sphi 0, %s32
      %s52 = sphi 0, %s52
      %s54 = sphi 0, %s52
      %s55 = sphi 0, %s54
      %s69 = sphi 0, %s55
      %s73 = sphi 0, %s73
      %s75 = sphi 0, %s73
      %s76 = sphi 0, %s75
      %s90 = sphi 0, %s76
      %s94 = sphi 0, %s94
      %s96 = sphi 0, %s94
      %s97 = sphi 0, %s96
      %s111 = sphi 0, %s97
      %s115 = sphi 0, %s115
      %s117 = sphi 0, %s115
      %s118 = sphi 0, %s117
      %s132 = sphi 0, %s118
      %s136 = sphi 0, %s136
      %s138 = sphi 0, %s136
      %s139 = sphi 0, %s138
      %s153 = sphi 0, %s139
      %s159 = sphi 0, %s161
      %s162 = sphi 0, %s159
      %s163 = sphi 0, %s162
      %s179 = sphi 0, %s163
    $region4: #{tpu_custom_call.1} parent=1 // loop_header_branch
      %21 = sbr.rel (%p19) target = $region8
    $region5: #{tpu_custom_call.1} parent=1 // loop_body
      %s23 = ssub.s32 %s18, 1
      %s24 = ssub.s32 %s18, 2
      %s25 = sadd.s32 %s18, 1
      %s26 = ssub.s32 %s18, %s25
      %p27 = scmp.eq.s32.totalorder %s26, 0
      %s29 = sadd.s32 %s28, 1
      %s30 = scalar_select %p27, %s28, %s29
      %p33 = pneg %p27
      %p34 = scmp.eq.s32.totalorder %s18, 1
      %p35 = por %p33, %p34
      %p36 = scmp.ne.s32.totalorder %s28, %s31
      %p37 = scmp.eq.s32.totalorder %s18, 0
      %p38 = por %p36, %p37
      %p39 = scmp.ne.s32.totalorder %s28, %s31
      %p40 = scmp.eq.s32.totalorder %s23, 1
      %p41 = por %p39, %p40
      %p42 = scmp.ne.s32.totalorder %s31, %s32
      %p43 = scmp.eq.s32.totalorder %s23, 0
      %p44 = por %p42, %p43
      %p45 = scmp.ne.s32.totalorder %s31, %s32
      %p46 = scmp.eq.s32.totalorder %s24, 1
      %p47 = por %p45, %p46
      %p49 = scmp.ne.s32.totalorder %s32, %s48
      %p50 = scmp.eq.s32.totalorder %s24, 0
      %p51 = por %p49, %p50
      %s53 = sadd.s32 %s52, 1
      %p56 = scmp.eq.s32.totalorder %s18, 1
      %p57 = scmp.ne.s32.totalorder %s52, %s54
      %p58 = scmp.eq.s32.totalorder %s18, 0
      %p59 = por %p57, %p58
      %p60 = scmp.ne.s32.totalorder %s52, %s54
      %p61 = scmp.eq.s32.totalorder %s23, 1
      %p62 = por %p60, %p61
      %p63 = scmp.ne.s32.totalorder %s54, %s55
      %p64 = scmp.eq.s32.totalorder %s23, 0
      %p65 = por %p63, %p64
      %p66 = scmp.ne.s32.totalorder %s54, %s55
      %p67 = scmp.eq.s32.totalorder %s24, 1
      %p68 = por %p66, %p67
      %p70 = scmp.ne.s32.totalorder %s55, %s69
      %p71 = scmp.eq.s32.totalorder %s24, 0
      %p72 = por %p70, %p71
      %s74 = sadd.s32 %s73, 1
      %p77 = scmp.eq.s32.totalorder %s18, 1
      %p78 = scmp.ne.s32.totalorder %s73, %s75
      %p79 = scmp.eq.s32.totalorder %s18, 0
      %p80 = por %p78, %p79
      %p81 = scmp.ne.s32.totalorder %s73, %s75
      %p82 = scmp.eq.s32.totalorder %s23, 1
      %p83 = por %p81, %p82
      %p84 = scmp.ne.s32.totalorder %s75, %s76
      %p85 = scmp.eq.s32.totalorder %s23, 0
      %p86 = por %p84, %p85
      %p87 = scmp.ne.s32.totalorder %s75, %s76
      %p88 = scmp.eq.s32.totalorder %s24, 1
      %p89 = por %p87, %p88
      %p91 = scmp.ne.s32.totalorder %s76, %s90
      %p92 = scmp.eq.s32.totalorder %s24, 0
      %p93 = por %p91, %p92
      %s95 = sadd.s32 %s94, 1
      %p98 = scmp.eq.s32.totalorder %s18, 1
      %p99 = scmp.ne.s32.totalorder %s94, %s96
      %p100 = scmp.eq.s32.totalorder %s18, 0
      %p101 = por %p99, %p100
      %p102 = scmp.ne.s32.totalorder %s94, %s96
      %p103 = scmp.eq.s32.totalorder %s23, 1
      %p104 = por %p102, %p103
      %p105 = scmp.ne.s32.totalorder %s96, %s97
      %p106 = scmp.eq.s32.totalorder %s23, 0
      %p107 = por %p105, %p106
      %p108 = scmp.ne.s32.totalorder %s96, %s97
      %p109 = scmp.eq.s32.totalorder %s24, 1
      %p110 = por %p108, %p109
      %p112 = scmp.ne.s32.totalorder %s97, %s111
      %p113 = scmp.eq.s32.totalorder %s24, 0
      %p114 = por %p112, %p113
      %s116 = sadd.s32 %s115, 1
      %p119 = scmp.eq.s32.totalorder %s18, 1
      %p120 = scmp.ne.s32.totalorder %s115, %s117
      %p121 = scmp.eq.s32.totalorder %s18, 0
      %p122 = por %p120, %p121
      %p123 = scmp.ne.s32.totalorder %s115, %s117
      %p124 = scmp.eq.s32.totalorder %s23, 1
      %p125 = por %p123, %p124
      %p126 = scmp.ne.s32.totalorder %s117, %s118
      %p127 = scmp.eq.s32.totalorder %s23, 0
      %p128 = por %p126, %p127
      %p129 = scmp.ne.s32.totalorder %s117, %s118
      %p130 = scmp.eq.s32.totalorder %s24, 1
      %p131 = por %p129, %p130
      %p133 = scmp.ne.s32.totalorder %s118, %s132
      %p134 = scmp.eq.s32.totalorder %s24, 0
      %p135 = por %p133, %p134
      %s137 = sadd.s32 %s136, 1
      %p140 = scmp.eq.s32.totalorder %s18, 1
      %p141 = scmp.ne.s32.totalorder %s136, %s138
      %p142 = scmp.eq.s32.totalorder %s18, 0
      %p143 = por %p141, %p142
      %p144 = scmp.ne.s32.totalorder %s136, %s138
      %p145 = scmp.eq.s32.totalorder %s23, 1
      %p146 = por %p144, %p145
      %p147 = scmp.ne.s32.totalorder %s138, %s139
      %p148 = scmp.eq.s32.totalorder %s23, 0
      %p149 = por %p147, %p148
      %p150 = scmp.ne.s32.totalorder %s138, %s139
      %p151 = scmp.eq.s32.totalorder %s24, 1
      %p152 = por %p150, %p151
      %p154 = scmp.ne.s32.totalorder %s139, %s153
      %p155 = scmp.eq.s32.totalorder %s24, 0
      %p156 = por %p154, %p155
      %s157 = ssub.s32 %s18, %s25
      %p158 = scmp.eq.s32.totalorder %s157, 0
      %s160 = sadd.s32 %s159, 1
      %s161 = scalar_select %p158, %s159, %s160
      %p164 = pneg %p158
      %p165 = scmp.eq.s32.totalorder %s18, 1
      %p166 = por %p164, %p165
      %p167 = scmp.ne.s32.totalorder %s159, %s162
      %p168 = scmp.eq.s32.totalorder %s18, 0
      %p169 = por %p167, %p168
      %p170 = scmp.ne.s32.totalorder %s159, %s162
      %p171 = scmp.eq.s32.totalorder %s23, 1
      %p172 = por %p170, %p171
      %p173 = scmp.ne.s32.totalorder %s162, %s163
      %p174 = scmp.eq.s32.totalorder %s23, 0
      %p175 = por %p173, %p174
      %p176 = scmp.ne.s32.totalorder %s162, %s163
      %p177 = scmp.eq.s32.totalorder %s24, 1
      %p178 = por %p176, %p177
      %p180 = scmp.ne.s32.totalorder %s163, %s179
      %p181 = scmp.eq.s32.totalorder %s24, 0
      %p182 = por %p180, %p181
      %p183 = scmp.le.s32.totalorder 1, %s18
      %p184 = scmp.lt.s32.totalorder %s18, 3
      %p185 = pnand %p183, %p184
      %p186 = pneg %p185
      // Predicated region
      $region9: #{tpu_custom_call.1} parent=5 // pred_check
        _
      $region10: #{tpu_custom_call.1} parent=5 // pred_check_branch
        %188 = sbr.rel (%p185) target = $region12
      $region11: #{tpu_custom_call.1} parent=5 // pred_region
        %s189 = ssub.s32 %s18, 1
        // Predicated region
        $region13: #{tpu_custom_call.1} parent=11 // pred_check
          %p190 = pneg %p65
        $region14: #{tpu_custom_call.1} parent=11 // pred_check_branch
          %192 = sbr.rel (%p190) target = $region16
        $region15: #{tpu_custom_call.1} parent=11 // pred_region
          _
        $region16: #{tpu_custom_call.1} parent=11 // pred_fallthru
          _
        // Predicated region
        $region17: #{tpu_custom_call.1} parent=11 // pred_check
          %p193 = pneg %p86
        $region18: #{tpu_custom_call.1} parent=11 // pred_check_branch
          %195 = sbr.rel (%p193) target = $region20
        $region19: #{tpu_custom_call.1} parent=11 // pred_region
          _
        $region20: #{tpu_custom_call.1} parent=11 // pred_fallthru
          _
        // Predicated region
        $region21: #{tpu_custom_call.1} parent=11 // pred_check
          %p196 = pneg %p107
        $region22: #{tpu_custom_call.1} parent=11 // pred_check_branch
          %198 = sbr.rel (%p196) target = $region24
        $region23: #{tpu_custom_call.1} parent=11 // pred_region
          _
        $region24: #{tpu_custom_call.1} parent=11 // pred_fallthru
          _
        // Predicated region
        $region25: #{tpu_custom_call.1} parent=11 // pred_check
          %p199 = pneg %p128
        $region26: #{tpu_custom_call.1} parent=11 // pred_check_branch
          %201 = sbr.rel (%p199) target = $region28
        $region27: #{tpu_custom_call.1} parent=11 // pred_region
          _
        $region28: #{tpu_custom_call.1} parent=11 // pred_fallthru
          _
        // Predicated region
        $region29: #{tpu_custom_call.1} parent=11 // pred_check
          %p202 = pneg %p149
        $region30: #{tpu_custom_call.1} parent=11 // pred_check_branch
          %204 = sbr.rel (%p202) target = $region32
        $region31: #{tpu_custom_call.1} parent=11 // pred_region
          _
        $region32: #{tpu_custom_call.1} parent=11 // pred_fallthru
          _
      $region12: #{tpu_custom_call.1} parent=5 // pred_fallthru
        _
      %p205 = scmp.lt.s32.totalorder %s18, 2
      // Predicated region
      $region33: #{tpu_custom_call.1} parent=5 // pred_check
        %p206 = pneg %p205
      $region34: #{tpu_custom_call.1} parent=5 // pred_check_branch
        %208 = sbr.rel (%p206) target = $region36
      $region35: #{tpu_custom_call.1} parent=5 // pred_region
        // Predicated region
        $region37: #{tpu_custom_call.1} parent=35 // pred_check
          %p209 = pneg %p38
        $region38: #{tpu_custom_call.1} parent=35 // pred_check_branch
          %211 = sbr.rel (%p209) target = $region40
        $region39: #{tpu_custom_call.1} parent=35 // pred_region
          %s212 = sand.u32 %s28, 1
          %s213 = scalar_lea.sflag [#allocation4], %s212
          %s214 = sand.u32 %s28, 1
          %s215 = smul.addr %s214, 16
          %s216 = scalar_lea.vmem [#allocation3], %s215
          %s217 = smul.u32 4, %s18
          %s219 = ssub.s32 256, 256
          %220 = vsyncadd %s213, %s219
          %s221 = smul.addr %s217, 64
          %s222 = scalar_lea.hbm %s0, %s221
          %s224 = sshll.u32 %s216, 4
          %s225 = int_to_ptr.vmem [resolvable:$true] %s224
          %227 = dma.hbm_to_vmem [thread:$0]  %s222, 256, %s225, %s213
        $region40: #{tpu_custom_call.1} parent=35 // pred_fallthru
          _
      $region36: #{tpu_custom_call.1} parent=5 // pred_fallthru
        _
      %p228 = scmp.le.s32.totalorder 1, %s18
      %p229 = scmp.lt.s32.totalorder %s18, 3
      %p230 = pnand %p228, %p229
      %p231 = pneg %p230
      // Predicated region
      $region41: #{tpu_custom_call.1} parent=5 // pred_check
        _
      $region42: #{tpu_custom_call.1} parent=5 // pred_check_branch
        %233 = sbr.rel (%p230) target = $region44
      $region43: #{tpu_custom_call.1} parent=5 // pred_region
        %s234 = ssub.s32 %s18, 1
        %s235 = sand.u32 %s31, 1
        %s236 = scalar_lea.sflag [#allocation4], %s235
        %s237 = sand.u32 %s31, 1
        %s238 = smul.addr %s237, 16
        %s239 = scalar_lea.vmem [#allocation3], %s238
        // Predicated region
        $region45: #{tpu_custom_call.1} parent=43 // pred_check
          %p240 = pneg %p44
        $region46: #{tpu_custom_call.1} parent=43 // pred_check_branch
          %242 = sbr.rel (%p240) target = $region48
        $region47: #{tpu_custom_call.1} parent=43 // pred_region
          %243 = dma.done %s236, 256
        $region48: #{tpu_custom_call.1} parent=43 // pred_fallthru
          _
        %s244 = sand.u32 %s31, 1
        %s245 = scalar_lea.sflag [#allocation4], %s244
        %s246 = sand.u32 %s31, 1
        %s247 = smul.addr %s246, 16
        %s248 = scalar_lea.vmem [#allocation3], %s247
        %p249 = pneg %p44
        %p250 = pneg %p41
        %p251 = pneg %p65
        %p252 = pneg %p62
        %p253 = pneg %p86
        %p254 = pneg %p83
        %p255 = pneg %p107
        %p256 = pneg %p104
        %p257 = pneg %p128
        %p258 = pneg %p125
        %p259 = pneg %p149
        %p260 = pneg %p146
        %p261 = pneg %p175
        %p262 = pneg %p172
        %s263 = sand.u32 %s162, 1
        %s264 = scalar_lea.sflag [#allocation5], %s263
        %s265 = sand.u32 %s162, 1
        %s266 = smul.addr %s265, 16
        %s267 = scalar_lea.vmem [#allocation6], %s266
        %s268 = smul.u32 4, %s23
        %s269 = smul.u32 4, %s23
        %v270 = vld [vmem:[%s239] sm:$0xff]
        %v271 = vld [vmem:[%s239 + $0x8] sm:$0xff]
        %v272 = vmax.f32 %v270, 0.0
        %v273 = vmax.f32 %v271, 0.0
        %v274 = vld [vmem:[%s1] sm:$0xff]
        %v275 = vld [vmem:[%s2] sm:$0xff]
        %277 = vset.pattern.permute.xlu0 0
        %278 = vperm.xlu0 %277, %v275
        %v279 = vpop.permute.xlu0 %278
        %v283 = vcombine.high %v272, %v272
        %v284 = vcombine.high %v273, %v273
        %vm285 = vcmask 31744
        %v287 = vsel %vm285, %v274, 0
        %vm289 = vcmask 1043456
        %v290 = vsel %vm289, %v272, 0
        %v292 = vsel %vm289, %v283, 0
        %v294 = vsel %vm289, %v273, 0
        %v296 = vsel %vm289, %v284, 0
        %298 = vmatprep.subr.mxu0 0.0
        %299 = vmatpush1.msra.mxu0 0.0
        %300 = vmatprep.subr.mxu0 0.0
        %301 = vmatpush1.msra.mxu0 0.0
        %302 = vmatprep.subr.mxu0 0.0
        %303 = vmatpush1.msra.mxu0 0.0
        %304 = vmatprep.subr.mxu0 0.0
        %305 = vmatpush1.msra.mxu0 0.0
        %306 = vmatprep.subr.mxu0 0.0
        %307 = vmatpush1.msra.mxu0 0.0
        %308 = vmatprep.subr.mxu0 0.0
        %309 = vmatpush1.msra.mxu0 0.0
        %310 = vmatprep.subr.mxu0 0.0
        %311 = vmatpush1.msra.mxu0 0.0
        %312 = vmatprep.subr.mxu0 0.0
        %313 = vmatpush1.msra.mxu0 0.0
        %314 = vmatprep.subr.mxu0 0.0
        %315 = vmatpush1.msra.mxu0 0.0
        %316 = vmatprep.subr.mxu0 0.0
        %317 = vmatpush1.msra.mxu0 0.0
        %318 = vmatprep.subr.mxu0 0.0
        %319 = vmatpush1.msra.mxu0 0.0
        %320 = vmatprep.subr.mxu0 0.0
        %321 = vmatpush1.msra.mxu0 0.0
        %322 = vmatprep.subr.mxu0 0.0
        %323 = vmatpush1.msra.mxu0 0.0
        %324 = vmatprep.subr.mxu0 0.0
        %325 = vmatpush1.msra.mxu0 0.0
        %326 = vmatprep.subr.mxu0 0.0
        %327 = vmatpush1.msra.mxu0 0.0
        %328 = vmatprep.subr.mxu0 %v292
        %329 = vmatpush1.msra.mxu0 %v290
        %330 = vmatprep.subr.mxu0 0.0
        %331 = vmatpush2.msra.mxu0 0.0
        %332 = vmatprep.subr.mxu0 0.0
        %333 = vmatpush2.msra.mxu0 0.0
        %334 = vmatprep.subr.mxu0 0.0
        %335 = vmatpush2.msra.mxu0 0.0
        %336 = vmatprep.subr.mxu0 0.0
        %337 = vmatpush2.msra.mxu0 0.0
        %338 = vmatprep.subr.mxu0 0.0
        %339 = vmatpush2.msra.mxu0 0.0
        %340 = vmatprep.subr.mxu0 0.0
        %341 = vmatpush2.msra.mxu0 0.0
        %342 = vmatprep.subr.mxu0 0.0
        %343 = vmatpush2.msra.mxu0 0.0
        %344 = vmatprep.subr.mxu0 0.0
        %345 = vmatpush2.msra.mxu0 0.0
        %346 = vmatprep.subr.mxu0 0.0
        %347 = vmatpush2.msra.mxu0 0.0
        %348 = vmatprep.subr.mxu0 0.0
        %349 = vmatpush2.msra.mxu0 0.0
        %350 = vmatprep.subr.mxu0 0.0
        %351 = vmatpush2.msra.mxu0 0.0
        %352 = vmatprep.subr.mxu0 0.0
        %353 = vmatpush2.msra.mxu0 0.0
        %354 = vmatprep.subr.mxu0 0.0
        %355 = vmatpush2.msra.mxu0 0.0
        %356 = vmatprep.subr.mxu0 0.0
        %357 = vmatpush2.msra.mxu0 0.0
        %358 = vmatprep.subr.mxu0 0.0
        %359 = vmatpush2.msra.mxu0 0.0
        %360 = vmatprep.subr.mxu0 0.0
        %361 = vmatpush2.msra.mxu0 0.0
        %362 = vmatprep.mubr.f32.mxu0 0.0
        %363 = vmatmul.mubr.f32.gmra.mxu0 %v287
        %v364 = vpop.f32.mrf.mxu0
        %v365 = vadd.f32 %v279, %v364
        %v366 = vpop.f32.mrf.mxu0
        %v367 = vadd.f32 %v279, %v366
        %368 = vdwg.mxu0
        %369 = vmatprep.subr.mxu0 0.0
        %370 = vmatpush1.msra.mxu0 0.0
        %371 = vmatprep.subr.mxu0 0.0
        %372 = vmatpush1.msra.mxu0 0.0
        %373 = vmatprep.subr.mxu0 0.0
        %374 = vmatpush1.msra.mxu0 0.0
        %375 = vmatprep.subr.mxu0 0.0
        %376 = vmatpush1.msra.mxu0 0.0
        %377 = vmatprep.subr.mxu0 0.0
        %378 = vmatpush1.msra.mxu0 0.0
        %379 = vmatprep.subr.mxu0 0.0
        %380 = vmatpush1.msra.mxu0 0.0
        %381 = vmatprep.subr.mxu0 0.0
        %382 = vmatpush1.msra.mxu0 0.0
        %383 = vmatprep.subr.mxu0 0.0
        %384 = vmatpush1.msra.mxu0 0.0
        %385 = vmatprep.subr.mxu0 0.0
        %386 = vmatpush1.msra.mxu0 0.0
        %387 = vmatprep.subr.mxu0 0.0
        %388 = vmatpush1.msra.mxu0 0.0
        %389 = vmatprep.subr.mxu0 0.0
        %390 = vmatpush1.msra.mxu0 0.0
        %391 = vmatprep.subr.mxu0 0.0
        %392 = vmatpush1.msra.mxu0 0.0
        %393 = vmatprep.subr.mxu0 0.0
        %394 = vmatpush1.msra.mxu0 0.0
        %395 = vmatprep.subr.mxu0 0.0
        %396 = vmatpush1.msra.mxu0 0.0
        %397 = vmatprep.subr.mxu0 0.0
        %398 = vmatpush1.msra.mxu0 0.0
        %399 = vmatprep.subr.mxu0 %v296
        %400 = vmatpush1.msra.mxu0 %v294
        %401 = vmatprep.subr.mxu0 0.0
        %402 = vmatpush2.msra.mxu0 0.0
        %403 = vmatprep.subr.mxu0 0.0
        %404 = vmatpush2.msra.mxu0 0.0
        %405 = vmatprep.subr.mxu0 0.0
        %406 = vmatpush2.msra.mxu0 0.0
        %407 = vmatprep.subr.mxu0 0.0
        %408 = vmatpush2.msra.mxu0 0.0
        %409 = vmatprep.subr.mxu0 0.0
        %410 = vmatpush2.msra.mxu0 0.0
        %411 = vmatprep.subr.mxu0 0.0
        %412 = vmatpush2.msra.mxu0 0.0
        %413 = vmatprep.subr.mxu0 0.0
        %414 = vmatpush2.msra.mxu0 0.0
        %415 = vmatprep.subr.mxu0 0.0
        %416 = vmatpush2.msra.mxu0 0.0
        %417 = vmatprep.subr.mxu0 0.0
        %418 = vmatpush2.msra.mxu0 0.0
        %419 = vmatprep.subr.mxu0 0.0
        %420 = vmatpush2.msra.mxu0 0.0
        %421 = vmatprep.subr.mxu0 0.0
        %422 = vmatpush2.msra.mxu0 0.0
        %423 = vmatprep.subr.mxu0 0.0
        %424 = vmatpush2.msra.mxu0 0.0
        %425 = vmatprep.subr.mxu0 0.0
        %426 = vmatpush2.msra.mxu0 0.0
        %427 = vmatprep.subr.mxu0 0.0
        %428 = vmatpush2.msra.mxu0 0.0
        %429 = vmatprep.subr.mxu0 0.0
        %430 = vmatpush2.msra.mxu0 0.0
        %431 = vmatprep.subr.mxu0 0.0
        %432 = vmatpush2.msra.mxu0 0.0
        %433 = vmatprep.mubr.f32.mxu0 0.0
        %434 = vmatmul.mubr.f32.gmra.mxu0 %v287
        %v435 = vpop.f32.mrf.mxu0
        %v436 = vadd.f32 %v279, %v435
        %v437 = vpop.f32.mrf.mxu0
        %v438 = vadd.f32 %v279, %v437
        %439 = vdwg.mxu0
        %v440 = vmax.f32 %v365, 0.0
        %v441 = vmax.f32 %v367, 0.0
        %v442 = vmax.f32 %v436, 0.0
        %v443 = vmax.f32 %v438, 0.0
        %v444 = vld [vmem:[%s5] ss:$2 sm:$0xf]
        %s445 = scalar_lea.vmem %s5, 1
        %v446 = vld [vmem:[%s445] ss:$2 sm:$0xf]
        %447 = vrot.lane.b32.xlu0 %v440, 127
        %v448 = vpop.permute.xlu0 %447
        %449 = vrot.lane.b32.xlu0 %v441, 127
        %v450 = vpop.permute.xlu0 %449
        %451 = vrot.lane.b32.xlu0 %v442, 127
        %v452 = vpop.permute.xlu0 %451
        %453 = vrot.lane.b32.xlu0 %v443, 127
        %v454 = vpop.permute.xlu0 %453
        %v455 = vlaneseq
        %v456 = vand.u32 %v455, 127
        %vm457 = vcmp.lt.s32.totalorder %v456, 127
        %v458 = vsel %vm457, %v452, %v454
        %v459 = vsel %vm457, %v450, %v452
        %v460 = vsel %vm457, %v448, %v450
        %v461 = vsel %vm457, %v454, %v448
        %v463 = vlaneseq
        %v464 = vshrl.u32 %v463, 7
        %v465 = vsub.s32 0, %v464
        %v466 = vrot.slane %v446, %v465
        %v467 = vlaneseq
        %v468 = vshrl.u32 %v467, 7
        %v469 = vsub.s32 1, %v468
        %v470 = vrot.slane %v446, %v469
        %v471 = vlaneseq
        %v472 = vshrl.u32 %v471, 7
        %v473 = vsub.s32 2, %v472
        %v474 = vrot.slane %v446, %v473
        %v475 = vlaneseq
        %v476 = vshrl.u32 %v475, 7
        %v477 = vsub.s32 3, %v476
        %v478 = vrot.slane %v446, %v477
        %v483 = vmul.f32 %v460, %v466
        %v484 = vmul.f32 %v459, %v470
        %v485 = vmul.f32 %v458, %v474
        %v486 = vmul.f32 %v461, %v478
        %487 = vst [vmem:[#allocation2] sm:$0xff] %v483
        %488 = vst [vmem:[#allocation2 + $0x8] sm:$0xff] %v484
        %489 = vst [vmem:[#allocation2 + $0x10] sm:$0xff] %v485
        %490 = vst [vmem:[#allocation2 + $0x18] sm:$0xff] %v486
        %491 = vst [vmem:[#allocation2 + $0x20] sm:$0xff] %v440
        %492 = vst [vmem:[#allocation2 + $0x28] sm:$0xff] %v441
        %493 = vst [vmem:[#allocation2 + $0x30] sm:$0xff] %v442
        %494 = vst [vmem:[#allocation2 + $0x38] sm:$0xff] %v443
        %495 = vrot.lane.b32.xlu0 %v440, 1
        %v496 = vpop.permute.xlu0 %495
        %497 = vrot.lane.b32.xlu0 %v441, 1
        %v498 = vpop.permute.xlu0 %497
        %499 = vrot.lane.b32.xlu0 %v442, 1
        %v500 = vpop.permute.xlu0 %499
        %501 = vrot.lane.b32.xlu0 %v443, 1
        %v502 = vpop.permute.xlu0 %501
        %vm503 = vcmp.lt.s32.totalorder %v456, 1
        %v504 = vsel %vm503, %v500, %v502
        %v505 = vsel %vm503, %v498, %v500
        %v506 = vsel %vm503, %v496, %v498
        %v507 = vsel %vm503, %v502, %v496
        %v509 = vlaneseq
        %v510 = vshrl.u32 %v509, 7
        %v511 = vsub.s32 0, %v510
        %v512 = vrot.slane %v444, %v511
        %v513 = vlaneseq
        %v514 = vshrl.u32 %v513, 7
        %v515 = vsub.s32 1, %v514
        %v516 = vrot.slane %v444, %v515
        %v517 = vlaneseq
        %v518 = vshrl.u32 %v517, 7
        %v519 = vsub.s32 2, %v518
        %v520 = vrot.slane %v444, %v519
        %v521 = vlaneseq
        %v522 = vshrl.u32 %v521, 7
        %v523 = vsub.s32 3, %v522
        %v524 = vrot.slane %v444, %v523
        %v529 = vmul.f32 %v507, %v512
        %v530 = vmul.f32 %v506, %v516
        %v531 = vmul.f32 %v505, %v520
        %v532 = vmul.f32 %v504, %v524
        %533 = vst [vmem:[#allocation2 + $0x40] sm:$0xff] %v529
        %534 = vst [vmem:[#allocation2 + $0x48] sm:$0xff] %v530
        %535 = vst [vmem:[#allocation2 + $0x50] sm:$0xff] %v531
        %536 = vst [vmem:[#allocation2 + $0x58] sm:$0xff] %v532
        %v537 = vld [vmem:[%s3] sm:$0xf]
        %v538 = vld [vmem:[#allocation2] sm:$0xff]
        %v539 = vld [vmem:[#allocation2 + $0x8] sm:$0xff]
        %v540 = vld [vmem:[#allocation2 + $0x10] sm:$0xff]
        %v541 = vld [vmem:[#allocation2 + $0x18] sm:$0xff]
        %v542 = vld [vmem:[#allocation2 + $0x20] sm:$0xff]
        %v543 = vld [vmem:[#allocation2 + $0x28] sm:$0xff]
        %v544 = vld [vmem:[#allocation2 + $0x30] sm:$0xff]
        %v545 = vld [vmem:[#allocation2 + $0x38] sm:$0xff]
        %v546 = vld [vmem:[#allocation2 + $0x40] sm:$0xff]
        %v547 = vld [vmem:[#allocation2 + $0x48] sm:$0xff]
        %v548 = vld [vmem:[#allocation2 + $0x50] sm:$0xff]
        %v549 = vld [vmem:[#allocation2 + $0x58] sm:$0xff]
        %v550 = vld [vmem:[%s4] sm:$0xf]
        %552 = vset.pattern.permute.xlu0 0
        %553 = vperm.xlu0 %552, %v550
        %v554 = vpop.permute.xlu0 %553
        %vm556 = vcmask 195584
        %v558 = vsel %vm556, %v537, 0
        %560 = vmatprep.subr.mxu0 0.0
        %561 = vmatpush1.msra.mxu0 0.0
        %562 = vmatprep.subr.mxu0 0.0
        %563 = vmatpush1.msra.mxu0 0.0
        %564 = vmatprep.subr.mxu0 0.0
        %565 = vmatpush1.msra.mxu0 0.0
        %566 = vmatprep.subr.mxu0 0.0
        %567 = vmatpush1.msra.mxu0 0.0
        %568 = vmatprep.subr.mxu0 0.0
        %569 = vmatpush1.msra.mxu0 0.0
        %570 = vmatprep.subr.mxu0 0.0
        %571 = vmatpush1.msra.mxu0 0.0
        %572 = vmatprep.subr.mxu0 0.0
        %573 = vmatpush1.msra.mxu0 0.0
        %574 = vmatprep.subr.mxu0 0.0
        %575 = vmatpush1.msra.mxu0 0.0
        %576 = vmatprep.subr.mxu0 0.0
        %577 = vmatpush1.msra.mxu0 0.0
        %578 = vmatprep.subr.mxu0 0.0
        %579 = vmatpush1.msra.mxu0 0.0
        %580 = vmatprep.subr.mxu0 0.0
        %581 = vmatpush1.msra.mxu0 0.0
        %582 = vmatprep.subr.mxu0 0.0
        %583 = vmatpush1.msra.mxu0 0.0
        %584 = vmatprep.subr.mxu0 0.0
        %585 = vmatpush1.msra.mxu0 0.0
        %586 = vmatprep.subr.mxu0 %v547
        %587 = vmatpush1.msra.mxu0 %v546
        %588 = vmatprep.subr.mxu0 %v543
        %589 = vmatpush1.msra.mxu0 %v542
        %590 = vmatprep.subr.mxu0 %v539
        %591 = vmatpush1.msra.mxu0 %v538
        %592 = vmatprep.subr.mxu0 0.0
        %593 = vmatpush2.msra.mxu0 0.0
        %594 = vmatprep.subr.mxu0 0.0
        %595 = vmatpush2.msra.mxu0 0.0
        %596 = vmatprep.subr.mxu0 0.0
        %597 = vmatpush2.msra.mxu0 0.0
        %598 = vmatprep.subr.mxu0 0.0
        %599 = vmatpush2.msra.mxu0 0.0
        %600 = vmatprep.subr.mxu0 0.0
        %601 = vmatpush2.msra.mxu0 0.0
        %602 = vmatprep.subr.mxu0 0.0
        %603 = vmatpush2.msra.mxu0 0.0
        %604 = vmatprep.subr.mxu0 0.0
        %605 = vmatpush2.msra.mxu0 0.0
        %606 = vmatprep.subr.mxu0 0.0
        %607 = vmatpush2.msra.mxu0 0.0
        %608 = vmatprep.subr.mxu0 0.0
        %609 = vmatpush2.msra.mxu0 0.0
        %610 = vmatprep.subr.mxu0 0.0
        %611 = vmatpush2.msra.mxu0 0.0
        %612 = vmatprep.subr.mxu0 0.0
        %613 = vmatpush2.msra.mxu0 0.0
        %614 = vmatprep.subr.mxu0 0.0
        %615 = vmatpush2.msra.mxu0 0.0
        %616 = vmatprep.subr.mxu0 0.0
        %617 = vmatpush2.msra.mxu0 0.0
        %618 = vmatprep.subr.mxu0 0.0
        %619 = vmatpush2.msra.mxu0 0.0
        %620 = vmatprep.subr.mxu0 0.0
        %621 = vmatpush2.msra.mxu0 0.0
        %622 = vmatprep.subr.mxu0 0.0
        %623 = vmatpush2.msra.mxu0 0.0
        %624 = vmatprep.mubr.f32.mxu0 0.0
        %625 = vmatmul.mubr.f32.gmra.mxu0 %v558
        %v626 = vpop.f32.mrf.mxu0
        %v627 = vadd.f32 %v554, %v626
        %v628 = vpop.f32.mrf.mxu0
        %v629 = vadd.f32 %v554, %v628
        %630 = vdwg.mxu0
        %631 = vmatprep.subr.mxu0 0.0
        %632 = vmatpush1.msra.mxu0 0.0
        %633 = vmatprep.subr.mxu0 0.0
        %634 = vmatpush1.msra.mxu0 0.0
        %635 = vmatprep.subr.mxu0 0.0
        %636 = vmatpush1.msra.mxu0 0.0
        %637 = vmatprep.subr.mxu0 0.0
        %638 = vmatpush1.msra.mxu0 0.0
        %639 = vmatprep.subr.mxu0 0.0
        %640 = vmatpush1.msra.mxu0 0.0
        %641 = vmatprep.subr.mxu0 0.0
        %642 = vmatpush1.msra.mxu0 0.0
        %643 = vmatprep.subr.mxu0 0.0
        %644 = vmatpush1.msra.mxu0 0.0
        %645 = vmatprep.subr.mxu0 0.0
        %646 = vmatpush1.msra.mxu0 0.0
        %647 = vmatprep.subr.mxu0 0.0
        %648 = vmatpush1.msra.mxu0 0.0
        %649 = vmatprep.subr.mxu0 0.0
        %650 = vmatpush1.msra.mxu0 0.0
        %651 = vmatprep.subr.mxu0 0.0
        %652 = vmatpush1.msra.mxu0 0.0
        %653 = vmatprep.subr.mxu0 0.0
        %654 = vmatpush1.msra.mxu0 0.0
        %655 = vmatprep.subr.mxu0 0.0
        %656 = vmatpush1.msra.mxu0 0.0
        %657 = vmatprep.subr.mxu0 %v549
        %658 = vmatpush1.msra.mxu0 %v548
        %659 = vmatprep.subr.mxu0 %v545
        %660 = vmatpush1.msra.mxu0 %v544
        %661 = vmatprep.subr.mxu0 %v541
        %662 = vmatpush1.msra.mxu0 %v540
        %663 = vmatprep.subr.mxu0 0.0
        %664 = vmatpush2.msra.mxu0 0.0
        %665 = vmatprep.subr.mxu0 0.0
        %666 = vmatpush2.msra.mxu0 0.0
        %667 = vmatprep.subr.mxu0 0.0
        %668 = vmatpush2.msra.mxu0 0.0
        %669 = vmatprep.subr.mxu0 0.0
        %670 = vmatpush2.msra.mxu0 0.0
        %671 = vmatprep.subr.mxu0 0.0
        %672 = vmatpush2.msra.mxu0 0.0
        %673 = vmatprep.subr.mxu0 0.0
        %674 = vmatpush2.msra.mxu0 0.0
        %675 = vmatprep.subr.mxu0 0.0
        %676 = vmatpush2.msra.mxu0 0.0
        %677 = vmatprep.subr.mxu0 0.0
        %678 = vmatpush2.msra.mxu0 0.0
        %679 = vmatprep.subr.mxu0 0.0
        %680 = vmatpush2.msra.mxu0 0.0
        %681 = vmatprep.subr.mxu0 0.0
        %682 = vmatpush2.msra.mxu0 0.0
        %683 = vmatprep.subr.mxu0 0.0
        %684 = vmatpush2.msra.mxu0 0.0
        %685 = vmatprep.subr.mxu0 0.0
        %686 = vmatpush2.msra.mxu0 0.0
        %687 = vmatprep.subr.mxu0 0.0
        %688 = vmatpush2.msra.mxu0 0.0
        %689 = vmatprep.subr.mxu0 0.0
        %690 = vmatpush2.msra.mxu0 0.0
        %691 = vmatprep.subr.mxu0 0.0
        %692 = vmatpush2.msra.mxu0 0.0
        %693 = vmatprep.subr.mxu0 0.0
        %694 = vmatpush2.msra.mxu0 0.0
        %695 = vmatprep.mubr.f32.mxu0 0.0
        %696 = vmatmul.mubr.f32.gmra.mxu0 %v558
        %v697 = vpop.f32.mrf.mxu0
        %v698 = vadd.f32 %v554, %v697
        %v699 = vpop.f32.mrf.mxu0
        %v700 = vadd.f32 %v554, %v699
        %701 = vdwg.mxu0
        %v706 = vcombine.low %v627, %v629
        %v707 = vcombine.low %v698, %v700
        %v710 = vadd.f32 %v270, %v706
        %v711 = vadd.f32 %v271, %v707
        %712 = vst [vmem:[%s267] sm:$0xff] %v710
        %713 = vst [vmem:[%s267 + $0x8] sm:$0xff] %v711
        %s714 = sand.u32 %s162, 1
        %s715 = scalar_lea.sflag [#allocation5], %s714
        %s716 = sand.u32 %s162, 1
        %s717 = smul.addr %s716, 16
        %s718 = scalar_lea.vmem [#allocation6], %s717
        // Predicated region
        $region49: #{tpu_custom_call.1} parent=43 // pred_check
          %p719 = pneg %p172
        $region50: #{tpu_custom_call.1} parent=43 // pred_check_branch
          %721 = sbr.rel (%p719) target = $region52
        $region51: #{tpu_custom_call.1} parent=43 // pred_region
          %s722 = smul.u32 4, %s23
          %s724 = ssub.s32 256, 256
          %725 = vsyncadd %s715, %s724
          %s726 = smul.addr %s722, 64
          %s727 = scalar_lea.hbm %s6, %s726
          %s729 = sshll.u32 %s718, 4
          %s730 = int_to_ptr.vmem [resolvable:$true] %s729
          %732 = dma.vmem_to_hbm [thread:$0]  %s730, 256, %s727, %s715
        $region52: #{tpu_custom_call.1} parent=43 // pred_fallthru
          _
      $region44: #{tpu_custom_call.1} parent=5 // pred_fallthru
        _
      %p733 = scmp.le.s32.totalorder 2, %s18
      // Predicated region
      $region53: #{tpu_custom_call.1} parent=5 // pred_check
        %p734 = pneg %p733
      $region54: #{tpu_custom_call.1} parent=5 // pred_check_branch
        %736 = sbr.rel (%p734) target = $region56
      $region55: #{tpu_custom_call.1} parent=5 // pred_region
        %s737 = ssub.s32 %s18, 2
        // Predicated region
        $region57: #{tpu_custom_call.1} parent=55 // pred_check
          %p738 = pneg %p178
        $region58: #{tpu_custom_call.1} parent=55 // pred_check_branch
          %740 = sbr.rel (%p738) target = $region60
        $region59: #{tpu_custom_call.1} parent=55 // pred_region
          %s741 = sand.u32 %s163, 1
          %s742 = scalar_lea.sflag [#allocation5], %s741
          %s743 = sand.u32 %s163, 1
          %s744 = smul.addr %s743, 16
          %s745 = scalar_lea.vmem [#allocation6], %s744
          %746 = dma.done %s742, 256
        $region60: #{tpu_custom_call.1} parent=55 // pred_fallthru
          _
      $region56: #{tpu_custom_call.1} parent=5 // pred_fallthru
        _
    $region6: #{tpu_custom_call.1} parent=1 // loop_footer
      %s22 = sadd.s32 1, %s18
    $region7: #{tpu_custom_call.1} parent=1 // loop_footer_branch
      %17 = sbr.rel target = $region3
    $region8: #{tpu_custom_call.1} parent=1 // loop_exit
      _
    %747 = vsyncpa [#allocation4], 1
    %s748 = scalar_lea.sflag [#allocation4], 1
    %749 = vsyncpa %s748, 1
    %750 = vsyncpa [#allocation5], 1
    %s751 = scalar_lea.sflag [#allocation5], 1
    %752 = vsyncpa %s751, 1

</llo_original>
